<compile_context>
chip_gen: v7x
topology: tpu7x:2x2x1
jax: 0.10.0
libtpu: 0.0.40
codegen_flags: <defaults>
</compile_context>

<pallas_src>
import functools

import jax
import jax.numpy as jnp
from jax.experimental import pallas as pl
from jax.experimental.pallas import tpu as pltpu

# Hyper-parameters from AsymmetricLoss.__init__ defaults.
GAMMA_NEG = 2.0
GAMMA_POS = 1.0
CLIP = 0.01
EPS = 1e-8


def _focal_pow(base, gamma, eps):
    """base ** gamma for base >= 0.

    Small non-negative integer gammas are specialized to repeated multiplies
    (no EUP transcendentals); other gammas use a guarded exp/log with
    pow(0, g>0) == 0 (torch.pow semantics).
    """
    gf = float(gamma)
    if gf.is_integer() and 0.0 <= gf <= 8.0:
        gi = int(gf)
        if gi == 0:
            return jnp.ones_like(base)
        r = base
        for _ in range(gi - 1):
            r = r * base
        return r
    return jnp.where(
        base > 0.0,
        jnp.exp(gf * jnp.log(jnp.maximum(base, eps))),
        0.0,
    )


def _asl_kernel(x_ref, y_ref, out_ref, acc_ref, *,
                gamma_neg, gamma_pos, clip, eps, binary_targets):
    i = pl.program_id(1)

    @pl.when(i == 0)
    def _init():
        acc_ref[...] = jnp.zeros_like(acc_ref)

    x = x_ref[...].astype(jnp.float32)
    y = y_ref[...].astype(jnp.float32)

    # sigmoid / complementary probability (+ asymmetric clipping)
    xs_pos = jax.nn.sigmoid(x)
    xs_neg = 1.0 - xs_pos
    clipped = (clip is not None) and clip > 0
    if clipped:
        xs_neg = jnp.minimum(xs_neg + clip, 1.0)

    if binary_targets:
        # y in {0, 1}: select the relevant probability once -> one log/element.
        is_pos = y > 0.5
        p_sel = jnp.where(is_pos, xs_pos, xs_neg)
        loss = jnp.log(jnp.maximum(p_sel, eps))
        if gamma_neg > 0 or gamma_pos > 0:
            base = 1.0 - p_sel                       # == 1 - pt, >= 0
            w_pos = _focal_pow(base, gamma_pos, eps)
            w_neg = _focal_pow(base, gamma_neg, eps)
            loss = loss * jnp.where(is_pos, w_pos, w_neg)
    else:
        # Faithful soft-target path (matches the torch forward for y in [0,1]).
        los_pos = y * jnp.log(jnp.maximum(xs_pos, eps))
        if clipped and clip >= eps:
            log_neg = jnp.log(xs_neg)                # xs_neg >= clip >= eps
        else:
            log_neg = jnp.log(jnp.maximum(xs_neg, eps))
        loss = los_pos + (1.0 - y) * log_neg
        if gamma_neg > 0 or gamma_pos > 0:
            pt = xs_pos * y + xs_neg * (1.0 - y)
            base = 1.0 - pt
            g = gamma_pos * y + gamma_neg * (1.0 - y)
            w = jnp.where(
                base > 0.0,
                jnp.exp(g * jnp.log(jnp.maximum(base, eps))),
                jnp.where(g > 0.0, 0.0, 1.0),        # pow(0,0) == 1
            )
            loss = loss * w

    # Sublane-fold partial reduction: pure VPU vreg adds, no XLU, no SMEM RMW.
    tn, c = loss.shape
    acc_ref[...] += loss.reshape(tn // 8, 8, c).sum(axis=0)

    @pl.when(i == pl.num_programs(1) - 1)
    def _finalize():
        out_ref[0] = -acc_ref[...]


def _vmem_capacity_bytes():
    try:
        return int(pltpu.get_tpu_info().vmem_capacity_bytes)
    except Exception:
        return 64 * 1024 * 1024  # conservative fallback (v7x per-TC physical)


def asymmetric_loss(x, y, *, gamma_neg=GAMMA_NEG, gamma_pos=GAMMA_POS,
                    clip=CLIP, eps=EPS, binary_targets=True, tile_n=None):
    """-sum(ASL(x, y)) over all elements; returns a float32 scalar.

    Set binary_targets=False if y may contain soft (non {0,1}) targets.
    Inputs may be narrower dtypes (bf16 logits, int8 targets); the kernel
    casts to f32 internally.
    """
    assert x.shape == y.shape and x.ndim == 2
    n, c = x.shape
    assert n % 8 == 0, "batch must be a multiple of 8 (f32 sublane)"

    # Generation-aware VMEM budget: half of physical, capped at 64 MiB
    # (v7x: 64 MiB physical -> 32 MiB scoped; v5e/v6e: 128 MiB -> 64 MiB).
    vmem_cap = _vmem_capacity_bytes()
    scoped_vmem = min(vmem_cap // 2, 64 * 1024 * 1024)

    if tile_n is None:
        work_bytes = int(scoped_vmem * 0.75)
        # 2 inputs x 2 pipeline buffers at input dtype + headroom for f32
        # elementwise intermediates (~8 live f32 tile-rows).
        bytes_per_row = (2 * 2 * (x.dtype.itemsize + y.dtype.itemsize)
                         + 8 * 4) * c
        tile_n = max(8, min(2048, work_bytes // max(bytes_per_row, 1)))
        tile_n -= tile_n % 8
    tile_n = min(tile_n, n)
    while tile_n > 8 and n % tile_n:
        tile_n -= 8
    assert tile_n % 8 == 0 and n % tile_n == 0

    num_tiles = n // tile_n
    num_par = 2 if num_tiles % 2 == 0 else 1   # megacore split on v7x
    num_inner = num_tiles // num_par

    kernel = functools.partial(
        _asl_kernel,
        gamma_neg=gamma_neg, gamma_pos=gamma_pos, clip=clip, eps=eps,
        binary_targets=binary_targets)

    in_map = lambda p, i: (p * num_inner + i, 0)

    trans_per_elem = 3 if binary_targets else 6
    cost = pl.CostEstimate(
        flops=int(20 * n * c),
        transcendentals=int(trans_per_elem * n * c),
        bytes_accessed=int(x.size * x.dtype.itemsize
                           + y.size * y.dtype.itemsize
                           + num_par * 8 * c * 4),
    )

    partials = pl.pallas_call(
        kernel,
        out_shape=jax.ShapeDtypeStruct((num_par, 8, c), jnp.float32),
        grid_spec=pltpu.PrefetchScalarGridSpec(
            num_scalar_prefetch=0,
            grid=(num_par, num_inner),
            in_specs=[
                pl.BlockSpec((tile_n, c), in_map),
                pl.BlockSpec((tile_n, c), in_map),
            ],
            out_specs=pl.BlockSpec((1, 8, c), lambda p, i: (p, 0, 0)),
            scratch_shapes=[pltpu.VMEM((8, c), jnp.float32)],
        ),
        compiler_params=pltpu.CompilerParams(
            dimension_semantics=("parallel", "arbitrary"),
            vmem_limit_bytes=scoped_vmem),
        cost_estimate=cost,
    )(x, y)

    # Tiny (num_par, 8, C) final reduction done by XLA in the wrapper.
    return jnp.sum(partials)


def _reference(x, y):
    x = x.astype(jnp.float32)
    y = y.astype(jnp.float32)
    xs_pos = jax.nn.sigmoid(x)
    xs_neg = jnp.minimum(1.0 - xs_pos + CLIP, 1.0)
    los_pos = y * jnp.log(jnp.maximum(xs_pos, EPS))
    los_neg = (1.0 - y) * jnp.log(jnp.maximum(xs_neg, EPS))
    loss = los_pos + los_neg
    pt = xs_pos * y + xs_neg * (1.0 - y)
    g = GAMMA_POS * y + GAMMA_NEG * (1.0 - y)
    loss = loss * jnp.power(1.0 - pt, g)
    return -jnp.sum(loss)


if __name__ == "__main__":
    key = jax.random.PRNGKey(0)
    k1, k2 = jax.random.split(key)
    N, C = 16, 128  # small multi-label problem: 16 samples, 128 classes
    x = jax.random.normal(k1, (N, C), dtype=jnp.float32)
    y = (jax.random.uniform(k2, (N, C)) < 0.3).astype(jnp.float32)

    out = asymmetric_loss(x, y)
    out = jax.block_until_ready(out)

    ref = jax.block_until_ready(_reference(x, y))
    assert jnp.allclose(out, ref, rtol=1e-4, atol=1e-3), (out, ref)

    # Also exercise the faithful soft-target path once.
    out_soft = jax.block_until_ready(asymmetric_loss(x, y, binary_targets=False))
    assert jnp.allclose(out_soft, ref, rtol=1e-4, atol=1e-3), (out_soft, ref)

    print("KERNEL_OK")
</pallas_src>

<mosaic_0001>
module attributes {stable_mosaic.version = 11 : i64} {
  func.func @_asl_kernel(%arg0: i32, %arg1: i32, %arg2: memref<16x128xf32, #tpu.memory_space<vmem>>, %arg3: memref<16x128xf32, #tpu.memory_space<vmem>>, %arg4: memref<1x8x128xf32, #tpu.memory_space<vmem>>, %arg5: memref<8x128xf32, #tpu.memory_space<vmem>>) attributes {dimension_semantics = [#tpu.dimension_semantics<parallel>, #tpu.dimension_semantics<arbitrary>], iteration_bounds = array<i64: 1, 1>, scalar_prefetch = 0 : i64, scratch_operands = 1 : i64, tpu.core_type = #tpu.core_type<tc>, window_params = [{transform_indices = @transform_0, window_bounds = array<i64: 16, 128>}, {transform_indices = @transform_1, window_bounds = array<i64: 16, 128>}, {transform_indices = @transform_2, window_bounds = array<i64: 1, 8, 128>}]} {
    %c0_i32 = arith.constant 0 : i32
    %0 = arith.cmpi eq, %arg1, %c0_i32 : i32
    %1 = arith.extui %0 : i1 to i32
    %c0_i32_0 = arith.constant 0 : i32
    %2 = arith.cmpi ne, %1, %c0_i32_0 : i32
    scf.if %2 {
      %cst_17 = arith.constant 0.000000e+00 : f32
      %35 = vector.broadcast %cst_17 : f32 to vector<8x128xf32>
      %c0_18 = arith.constant 0 : index
      %c0_19 = arith.constant 0 : index
      %36 = vector.load %arg5[%c0_18, %c0_19] : memref<8x128xf32, #tpu.memory_space<vmem>>, vector<8x128xf32>
      tpu.vector_store %arg5[%c0_18, %c0_19], %35 {strides = array<i32>} : memref<8x128xf32, #tpu.memory_space<vmem>>, vector<8x128xf32>,
    } else {
    }
    %c0 = arith.constant 0 : index
    %c0_1 = arith.constant 0 : index
    %3 = vector.load %arg2[%c0, %c0_1] : memref<16x128xf32, #tpu.memory_space<vmem>>, vector<16x128xf32>
    %c0_2 = arith.constant 0 : index
    %c0_3 = arith.constant 0 : index
    %4 = vector.load %arg3[%c0_2, %c0_3] : memref<16x128xf32, #tpu.memory_space<vmem>>, vector<16x128xf32>
    %5 = arith.negf %3 : vector<16x128xf32>
    %6 = math.exp %5 : vector<16x128xf32>
    %cst = arith.constant 1.000000e+00 : f32
    %7 = vector.broadcast %cst : f32 to vector<16x128xf32>
    %8 = arith.addf %7, %6 : vector<16x128xf32>
    %9 = arith.divf %7, %8 : vector<16x128xf32>
    %cst_4 = arith.constant 1.000000e+00 : f32
    %10 = vector.broadcast %cst_4 : f32 to vector<16x128xf32>
    %11 = arith.subf %10, %9 : vector<16x128xf32>
    %cst_5 = arith.constant 0.00999999977 : f32
    %12 = vector.broadcast %cst_5 : f32 to vector<16x128xf32>
    %13 = arith.addf %11, %12 : vector<16x128xf32>
    %cst_6 = arith.constant 1.000000e+00 : f32
    %14 = vector.broadcast %cst_6 : f32 to vector<16x128xf32>
    %15 = arith.minimumf %13, %14 : vector<16x128xf32>
    %cst_7 = arith.constant 5.000000e-01 : f32
    %16 = vector.broadcast %cst_7 : f32 to vector<16x128xf32>
    %17 = arith.cmpf ogt, %4, %16 : vector<16x128xf32>
    %18 = arith.select %17, %9, %15 : vector<16x128xi1>, vector<16x128xf32>
    %cst_8 = arith.constant 9.99999993E-9 : f32
    %19 = vector.broadcast %cst_8 : f32 to vector<16x128xf32>
    %20 = arith.maximumf %18, %19 : vector<16x128xf32>
    %21 = math.log %20 : vector<16x128xf32>
    %cst_9 = arith.constant 1.000000e+00 : f32
    %22 = vector.broadcast %cst_9 : f32 to vector<16x128xf32>
    %23 = arith.subf %22, %18 : vector<16x128xf32>
    %24 = arith.mulf %23, %23 : vector<16x128xf32>
    %25 = arith.select %17, %23, %24 : vector<16x128xi1>, vector<16x128xf32>
    %26 = arith.mulf %21, %25 : vector<16x128xf32>
    %c0_10 = arith.constant 0 : index
    %c0_11 = arith.constant 0 : index
    %27 = vector.load %arg5[%c0_10, %c0_11] : memref<8x128xf32, #tpu.memory_space<vmem>>, vector<8x128xf32>
    %28 = vector.shape_cast %26 : vector<16x128xf32> to vector<2x8x128xf32>
    %cst_12 = arith.constant dense<0.000000e+00> : vector<8x128xf32>
    %29 = vector.multi_reduction <add>, %28, %cst_12 [0] : vector<2x8x128xf32> to vector<8x128xf32>
    %30 = arith.addf %27, %29 : vector<8x128xf32>
    %c0_13 = arith.constant 0 : index
    %c0_14 = arith.constant 0 : index
    %31 = vector.load %arg5[%c0_13, %c0_14] : memref<8x128xf32, #tpu.memory_space<vmem>>, vector<8x128xf32>
    tpu.vector_store %arg5[%c0_13, %c0_14], %30 {strides = array<i32>} : memref<8x128xf32, #tpu.memory_space<vmem>>, vector<8x128xf32>,
    %c0_i32_15 = arith.constant 0 : i32
    %32 = arith.cmpi eq, %arg1, %c0_i32_15 : i32
    %33 = arith.extui %32 : i1 to i32
    %c0_i32_16 = arith.constant 0 : i32
    %34 = arith.cmpi ne, %33, %c0_i32_16 : i32
    scf.if %34 {
      %c0_17 = arith.constant 0 : index
      %c0_18 = arith.constant 0 : index
      %35 = vector.load %arg5[%c0_17, %c0_18] : memref<8x128xf32, #tpu.memory_space<vmem>>, vector<8x128xf32>
      %cst_19 = arith.constant 0.000000e+00 : f32
      %36 = vector.broadcast %cst_19 : f32 to vector<8x128xf32>
      %37 = arith.subf %36, %35 : vector<8x128xf32>
      %c0_20 = arith.constant 0 : index
      %c0_21 = arith.constant 0 : index
      %c0_22 = arith.constant 0 : index
      %38 = vector.load %arg4[%c0_20, %c0_21, %c0_22] : memref<1x8x128xf32, #tpu.memory_space<vmem>>, vector<1x8x128xf32>
      %39 = vector.shape_cast %38 : vector<1x8x128xf32> to vector<8x128xf32>
      %40 = vector.shape_cast %37 : vector<8x128xf32> to vector<1x8x128xf32>
      tpu.vector_store %arg4[%c0_20, %c0_21, %c0_22], %40 {strides = array<i32>} : memref<1x8x128xf32, #tpu.memory_space<vmem>>, vector<1x8x128xf32>,
    } else {
    }
    return
  }
  func.func @transform_0(%arg0: i32, %arg1: i32) -> (i32, i32) {
    %c1_i32 = arith.constant 1 : i32
    %0 = arith.muli %arg0, %c1_i32 : i32
    %1 = arith.addi %0, %arg1 : i32
    %c0_i32 = arith.constant 0 : i32
    %c0_i32_0 = arith.constant 0 : i32
    return %1, %c0_i32 : i32, i32
  }
  func.func @transform_1(%arg0: i32, %arg1: i32) -> (i32, i32) {
    %c1_i32 = arith.constant 1 : i32
    %0 = arith.muli %arg0, %c1_i32 : i32
    %1 = arith.addi %0, %arg1 : i32
    %c0_i32 = arith.constant 0 : i32
    %c0_i32_0 = arith.constant 0 : i32
    return %1, %c0_i32 : i32, i32
  }
  func.func @transform_2(%arg0: i32, %arg1: i32) -> (i32, i32, i32) {
    %c0_i32 = arith.constant 0 : i32
    %c0_i32_0 = arith.constant 0 : i32
    %c0_i32_1 = arith.constant 0 : i32
    return %arg0, %c0_i32, %c0_i32_0 : i32, i32, i32
  }
}

</mosaic_0001>

<llo_original>
// kernel: tpu_custom_call.1
$region0: #{tpu_custom_call.1}
  #allocation0 [shape = 'u32[]', space=smem, size = 0x4, offset = 0x4, fixed_abs, tag = 'smem constant byte address 0x4 - core index']
  #allocation1 [shape = 'u32[144,128]{1,0:T(1,128)}', space=vmem, size = 0x12000, scoped, tag = 'internal scratch']
  #allocation2 [shape = 'f32[8,128]{1,0:T(8,128)}', space=vmem, size = 0x1000, scoped, tag = 'scratch operand']
  %s0 = inlined_call_operand.hbm [shape: f32[16,128], index: 0, kind: input, shape index: {}]
  %s1 = inlined_call_operand.hbm [shape: f32[16,128], index: 1, kind: input, shape index: {}]
  %s2 = inlined_call_operand.hbm [shape: f32[1,8,128], index: 2, kind: output, shape index: {}]
  %s3 = sld [smem:[#allocation0]]
  $region34: #{tpu_custom_call.1} parent=0
    _
  %s5 = ssub.s32 1, %s3
  %s6 = scalar_select 0, %s5, %s3
  $region1: #{tpu_custom_call.1} parent=0
    #allocation3 [shape = 'u8[8192]{0}', space=vmem, size = 0x2000, scoped, tag = 'input window, operand 0, single buffered']
    #allocation4 [shape = 's32[1]{0}', space=sflag, size = 0x4, scoped, tag = 'scoped memory for tpu_custom_call.1']
    #allocation5 [shape = 's32[1]{0}', space=sflag, size = 0x4, scoped, tag = 'scoped memory for tpu_custom_call.1']
    #allocation6 [shape = 'u8[8192]{0}', space=vmem, size = 0x2000, scoped, tag = 'input window, operand 1, single buffered']
    #allocation7 [shape = 's32[1]{0}', space=sflag, size = 0x4, scoped, tag = 'scoped memory for tpu_custom_call.1']
    #allocation8 [shape = 'u8[4096]{0}', space=vmem, size = 0x1000, scoped, tag = 'output window, operand 0, single buffered']
    %7 = vsyncpa [#allocation4], 0
    %8 = vsyncpa [#allocation7], 0
    %9 = vsyncpa [#allocation5], 0
    // Predicated region
    $region2: #{tpu_custom_call.1} parent=1 // pred_check
      _
    $region3: #{tpu_custom_call.1} parent=1 // pred_check_branch
      %11 = sbr.rel (0) target = $region5
    $region4: #{tpu_custom_call.1} parent=1 // pred_region
      %s12 = sadd.s32 0, 0
      %s13 = smul.u32 2, %s12
      %s15 = ssub.s32 256, 256
      %16 = vsyncadd [#allocation4], %s15
      %s17 = smul.addr %s13, 128
      %s18 = scalar_lea.hbm %s0, %s17
      %s19 = sshll.u32 [#allocation3], 4
      %s20 = int_to_ptr.vmem [resolvable:$true] %s19
      %25 = dma.hbm_to_vmem [thread:$0]  %s18, 256, %s20, [#allocation4], 128, 128, 8
    $region5: #{tpu_custom_call.1} parent=1 // pred_fallthru
      _
    // Predicated region
    $region6: #{tpu_custom_call.1} parent=1 // pred_check
      _
    $region7: #{tpu_custom_call.1} parent=1 // pred_check_branch
      %27 = sbr.rel (0) target = $region9
    $region8: #{tpu_custom_call.1} parent=1 // pred_region
      %s28 = sadd.s32 0, 0
      %s29 = smul.u32 2, %s28
      %s31 = ssub.s32 256, 256
      %32 = vsyncadd [#allocation7], %s31
      %s33 = smul.addr %s29, 128
      %s34 = scalar_lea.hbm %s1, %s33
      %s35 = sshll.u32 [#allocation6], 4
      %s36 = int_to_ptr.vmem [resolvable:$true] %s35
      %41 = dma.hbm_to_vmem [thread:$0]  %s34, 256, %s36, [#allocation7], 128, 128, 8
    $region9: #{tpu_custom_call.1} parent=1 // pred_fallthru
      _
    // Predicated region
    $region10: #{tpu_custom_call.1} parent=1 // pred_check
      _
    $region11: #{tpu_custom_call.1} parent=1 // pred_check_branch
      %43 = sbr.rel (0) target = $region13
    $region12: #{tpu_custom_call.1} parent=1 // pred_region
      %44 = dma.done [#allocation4], 256
    $region13: #{tpu_custom_call.1} parent=1 // pred_fallthru
      _
    // Predicated region
    $region14: #{tpu_custom_call.1} parent=1 // pred_check
      _
    $region15: #{tpu_custom_call.1} parent=1 // pred_check_branch
      %46 = sbr.rel (0) target = $region17
    $region16: #{tpu_custom_call.1} parent=1 // pred_region
      %47 = dma.done [#allocation7], 256
    $region17: #{tpu_custom_call.1} parent=1 // pred_fallthru
      _
    %s48 = sadd.s32 0, 0
    %s49 = smul.u32 2, %s48
    %s50 = sadd.s32 0, 0
    %s51 = smul.u32 2, %s50
    %p52 = scmp.eq.s32.totalorder 0, 0
    // Predicated region
    $region18: #{tpu_custom_call.1} parent=1 // pred_check
      %p53 = pneg %p52
    $region19: #{tpu_custom_call.1} parent=1 // pred_check_branch
      %55 = sbr.rel (%p53) target = $region21
    $region20: #{tpu_custom_call.1} parent=1 // pred_region
      %56 = vst [vmem:[#allocation2] sm:$0xff] 0.0
    $region21: #{tpu_custom_call.1} parent=1 // pred_fallthru
      _
    %v57 = vld [vmem:[#allocation3] sm:$0xff]
    %v58 = vld [vmem:[#allocation3 + $0x8] sm:$0xff]
    %v59 = vld [vmem:[#allocation6] sm:$0xff]
    %v60 = vld [vmem:[#allocation6 + $0x8] sm:$0xff]
    %v61 = vxor.u32 %v57, 2147483648
    %v62 = vxor.u32 %v58, 2147483648
    %v63 = vmul.f32 %v61, 1.442695
    %v64 = vpow.pop %v63
    %v65 = vmul.f32 %v62, 1.442695
    %v66 = vpow.pop %v65
    %v67 = vadd.f32 %v64, 1.0
    %v68 = vadd.f32 %v66, 1.0
    %v69 = vrcp.pop %v67
    %v70 = vmul.f32 1.0, %v69
    %v71 = vrcp.pop %v68
    %v72 = vmul.f32 1.0, %v71
    %v73 = vsub.f32 1.0, %v70
    %v74 = vsub.f32 1.0, %v72
    %v75 = vadd.f32 %v73, 0.01
    %v76 = vadd.f32 %v74, 0.01
    %v77 = vmin.f32 %v75, 1.0
    %v78 = vmin.f32 %v76, 1.0
    %vm79 = vcmp.gt.f32.partialorder %v59, 0.5
    %vm80 = vcmp.gt.f32.partialorder %v60, 0.5
    %v81 = vsel %vm79, %v70, %v77
    %v82 = vsel %vm80, %v72, %v78
    %v83 = vmax.f32 %v81, 1e-08
    %v84 = vmax.f32 %v82, 1e-08
    %v85 = vlog2.pop %v83
    %v86 = vmul.f32 %v85, 0.6931472
    %v87 = vlog2.pop %v84
    %v88 = vmul.f32 %v87, 0.6931472
    %v89 = vsub.f32 1.0, %v81
    %v90 = vsub.f32 1.0, %v82
    %v91 = vmul.f32 %v89, %v89
    %v92 = vmul.f32 %v90, %v90
    %v93 = vsel %vm79, %v89, %v91
    %v94 = vsel %vm80, %v90, %v92
    %v95 = vmul.f32 %v86, %v93
    %v96 = vmul.f32 %v88, %v94
    %v97 = vld [vmem:[#allocation2] sm:$0xff]
    %v98 = vadd.f32 %v95, %v96
    %v99 = vadd.f32 %v97, %v98
    %100 = vst [vmem:[#allocation2] sm:$0xff] %v99
    // Predicated region
    $region22: #{tpu_custom_call.1} parent=1 // pred_check
      %p101 = pneg %p52
    $region23: #{tpu_custom_call.1} parent=1 // pred_check_branch
      %103 = sbr.rel (%p101) target = $region25
    $region24: #{tpu_custom_call.1} parent=1 // pred_region
      %v104 = vld [vmem:[#allocation2] sm:$0xff]
      %v105 = vsub.f32 0.0, %v104
      %106 = vst [vmem:[#allocation8] sm:$0xff] %v105
    $region25: #{tpu_custom_call.1} parent=1 // pred_fallthru
      _
    // Predicated region
    $region26: #{tpu_custom_call.1} parent=1 // pred_check
      _
    $region27: #{tpu_custom_call.1} parent=1 // pred_check_branch
      %108 = sbr.rel (0) target = $region29
    $region28: #{tpu_custom_call.1} parent=1 // pred_region
      %s110 = ssub.s32 128, 128
      %111 = vsyncadd [#allocation5], %s110
      %s113 = sshll.u32 [#allocation8], 4
      %s114 = int_to_ptr.vmem [resolvable:$true] %s113
      %116 = dma.vmem_to_hbm [thread:$0]  %s114, 128, %s2, [#allocation5]
    $region29: #{tpu_custom_call.1} parent=1 // pred_fallthru
      _
    // Predicated region
    $region30: #{tpu_custom_call.1} parent=1 // pred_check
      _
    $region31: #{tpu_custom_call.1} parent=1 // pred_check_branch
      %118 = sbr.rel (0) target = $region33
    $region32: #{tpu_custom_call.1} parent=1 // pred_region
      %119 = dma.done [#allocation5], 128
    $region33: #{tpu_custom_call.1} parent=1 // pred_fallthru
      _
    %120 = vsyncpa [#allocation4], 1
    %121 = vsyncpa [#allocation7], 1
    %122 = vsyncpa [#allocation5], 1

</llo_original>
